<compile_context>
chip_gen: v7x
topology: tpu7x:2x2x1
jax: 0.10.0
libtpu: 0.0.40
codegen_flags: <defaults>
</compile_context>

<pallas_src>
import functools

import jax
import jax.numpy as jnp
from jax.experimental import pallas as pl
from jax.experimental.pallas import tpu as pltpu

_LANE = 128     # vreg lane width
_SUBLANE = 8    # vreg sublane count (f32)


def _round_up(n, m):
    return ((n + m - 1) // m) * m


def _encoder_kernel(x_ref,
                    w1_ref, b1_ref,
                    w2_ref, b2_ref,
                    w3_ref, b3_ref,
                    w4_ref, b4_ref,
                    o_ref):
    """Fused MLP: 4 MXU matmuls + bias + ReLU for one batch tile, all resident in VMEM."""
    h = x_ref[...]
    h = jnp.maximum(
        jnp.dot(h, w1_ref[...], preferred_element_type=jnp.float32) + b1_ref[...], 0.0)
    h = jnp.maximum(
        jnp.dot(h, w2_ref[...], preferred_element_type=jnp.float32) + b2_ref[...], 0.0)
    h = jnp.maximum(
        jnp.dot(h, w3_ref[...], preferred_element_type=jnp.float32) + b3_ref[...], 0.0)
    o_ref[...] = (
        jnp.dot(h, w4_ref[...], preferred_element_type=jnp.float32) + b4_ref[...]
    ).astype(o_ref.dtype)


def _choose_block_b(batch, cap=1024):
    """Pick a batch tile: as large as possible (<= cap), but keep >= 2 grid steps
    when the batch allows it (megacore sharding on v7x)."""
    rounded = _round_up(batch, _SUBLANE)
    if rounded > cap:
        return cap
    if batch >= 2 * _SUBLANE:
        return _round_up((batch + 1) // 2, _SUBLANE)
    return rounded


@functools.partial(jax.jit, static_argnames=("block_b",))
def met2_forward(x, params, block_b=None):
    """Run the Met2 encoder forward pass with a fused Pallas kernel.

    x:      (B, nInput) array (cast to f32)
    params: dict with w1..w4 of shape (in, out) and b1..b4 of shape (1, out)
    """
    x = x.astype(jnp.float32)
    B, n_in = x.shape
    h1 = params["w1"].shape[1]       # 256
    h2 = params["w2"].shape[1]       # 128
    h3 = params["w3"].shape[1]       # 96
    n_latent = params["w4"].shape[1]  # nLatent (30)

    # Lane-dense padding of the narrow dims (96 -> 128, nLatent -> multiple of 128).
    h1p = _round_up(h1, _LANE)
    h2p = _round_up(h2, _LANE)
    h3p = _round_up(h3, _LANE)
    nlp = _round_up(n_latent, _LANE)

    def pad2(a, rows, cols):
        a = a.astype(jnp.float32)
        return jnp.pad(a, ((0, rows - a.shape[0]), (0, cols - a.shape[1])))

    # Zero-padded rows/cols contribute exactly 0 (ReLU(0)=0), so the math is unchanged.
    w1 = pad2(params["w1"], n_in, h1p)
    b1 = pad2(params["b1"], 1, h1p)
    w2 = pad2(params["w2"], h1p, h2p)
    b2 = pad2(params["b2"], 1, h2p)
    w3 = pad2(params["w3"], h2p, h3p)
    b3 = pad2(params["b3"], 1, h3p)
    w4 = pad2(params["w4"], h3p, nlp)
    b4 = pad2(params["b4"], 1, nlp)

    if block_b is None:
        block_b = _choose_block_b(B)
    block_b = max(_SUBLANE, _round_up(int(block_b), _SUBLANE))

    B_pad = _round_up(B, block_b)
    if B_pad != B:
        x = jnp.pad(x, ((0, B_pad - B), (0, 0)))
    grid = (B_pad // block_b,)

    weight_bytes = 4 * (w1.size + b1.size + w2.size + b2.size +
                        w3.size + b3.size + w4.size + b4.size)

    cost = pl.CostEstimate(
        flops=2 * B_pad * (n_in * h1p + h1p * h2p + h2p * h3p + h3p * nlp),
        transcendentals=0,
        bytes_accessed=4 * B_pad * (n_in + nlp) + weight_bytes,
    )

    # Per-step VMEM: double-buffered x/out tiles + weight buffers + activation temps.
    act_bytes = 4 * block_b * (n_in + h1p + h2p + h3p + nlp)
    vmem_needed = 2 * 4 * block_b * (n_in + nlp) + 2 * weight_bytes + act_bytes
    vmem_limit = int(min(max(vmem_needed + (8 << 20), 32 << 20), 64 << 20))

    # Constant index_maps: Pallas keeps these blocks resident and skips re-DMA per step.
    full = lambda arr: pl.BlockSpec(arr.shape, lambda i: (0, 0))

    grid_spec = pltpu.PrefetchScalarGridSpec(
        num_scalar_prefetch=0,
        grid=grid,
        in_specs=[
            pl.BlockSpec((block_b, n_in), lambda i: (i, 0)),   # x, tiled over batch
            full(w1), full(b1),
            full(w2), full(b2),
            full(w3), full(b3),
            full(w4), full(b4),
        ],
        out_specs=pl.BlockSpec((block_b, nlp), lambda i: (i, 0)),  # lane-dense output
    )

    out = pl.pallas_call(
        _encoder_kernel,
        out_shape=jax.ShapeDtypeStruct((B_pad, nlp), jnp.float32),
        grid_spec=grid_spec,
        compiler_params=pltpu.CompilerParams(
            dimension_semantics=("parallel",),
            vmem_limit_bytes=vmem_limit,
        ),
        cost_estimate=cost,
    )(x, w1, b1, w2, b2, w3, b3, w4, b4)

    return out[:B, :n_latent]


def init_params(key, n_input, n_latent=30):
    """Deterministic init matching torch.nn.Linear's U(-1/sqrt(fan_in), 1/sqrt(fan_in))."""
    dims = [n_input, 256, 128, 96, n_latent]
    params = {}
    for idx in range(4):
        fan_in, fan_out = dims[idx], dims[idx + 1]
        key, kw, kb = jax.random.split(key, 3)
        bound = 1.0 / (fan_in ** 0.5)
        params[f"w{idx + 1}"] = jax.random.uniform(
            kw, (fan_in, fan_out), jnp.float32, -bound, bound)
        params[f"b{idx + 1}"] = jax.random.uniform(
            kb, (1, fan_out), jnp.float32, -bound, bound)
    return params


def _reference_forward(x, params):
    """Plain-JAX reference for correctness checking."""
    h = x
    for idx in range(1, 5):
        h = h @ params[f"w{idx}"] + params[f"b{idx}"]
        if idx < 4:
            h = jnp.maximum(h, 0.0)
    return h


# TODO(synk): fit() (K-Means labeling + triplet-margin training loop) is training-time
# machinery, not part of forward(); it is intentionally not translated to Pallas.

if __name__ == "__main__":
    key = jax.random.PRNGKey(0)
    k_param, k_x = jax.random.split(key)

    batch = 16         # small batch; auto block_b -> 8, grid of 2 steps
    n_input = 32       # datastream.nInput (synthetic)
    n_latent = 30      # default nLatent

    params = init_params(k_param, n_input, n_latent)
    x = jax.random.normal(k_x, (batch, n_input), jnp.float32)

    out = jax.block_until_ready(met2_forward(x, params))

    ref = _reference_forward(x, params)
    assert out.shape == (batch, n_latent)
    assert jnp.allclose(out, ref, atol=1e-4, rtol=1e-4), "mismatch vs reference"

    print("KERNEL_OK")
</pallas_src>

<mosaic_0001>
module attributes {stable_mosaic.version = 11 : i64} {
  func.func @_encoder_kernel(%arg0: i32, %arg1: memref<8x32xf32, #tpu.memory_space<vmem>>, %arg2: memref<32x256xf32, #tpu.memory_space<vmem>>, %arg3: memref<1x256xf32, #tpu.memory_space<vmem>>, %arg4: memref<256x128xf32, #tpu.memory_space<vmem>>, %arg5: memref<1x128xf32, #tpu.memory_space<vmem>>, %arg6: memref<128x128xf32, #tpu.memory_space<vmem>>, %arg7: memref<1x128xf32, #tpu.memory_space<vmem>>, %arg8: memref<128x128xf32, #tpu.memory_space<vmem>>, %arg9: memref<1x128xf32, #tpu.memory_space<vmem>>, %arg10: memref<8x128xf32, #tpu.memory_space<vmem>>) attributes {dimension_semantics = [#tpu.dimension_semantics<parallel>], iteration_bounds = array<i64: 2>, scalar_prefetch = 0 : i64, scratch_operands = 0 : i64, tpu.core_type = #tpu.core_type<tc>, window_params = [{transform_indices = @transform_0, window_bounds = array<i64: 8, 32>}, {pipeline_mode = #tpu.pipeline_mode<synchronous>, transform_indices = @transform_1, window_bounds = array<i64: 32, 256>}, {pipeline_mode = #tpu.pipeline_mode<synchronous>, transform_indices = @transform_2, window_bounds = array<i64: 1, 256>}, {pipeline_mode = #tpu.pipeline_mode<synchronous>, transform_indices = @transform_3, window_bounds = array<i64: 256, 128>}, {pipeline_mode = #tpu.pipeline_mode<synchronous>, transform_indices = @transform_4, window_bounds = array<i64: 1, 128>}, {pipeline_mode = #tpu.pipeline_mode<synchronous>, transform_indices = @transform_5, window_bounds = array<i64: 128, 128>}, {pipeline_mode = #tpu.pipeline_mode<synchronous>, transform_indices = @transform_6, window_bounds = array<i64: 1, 128>}, {pipeline_mode = #tpu.pipeline_mode<synchronous>, transform_indices = @transform_7, window_bounds = array<i64: 128, 128>}, {pipeline_mode = #tpu.pipeline_mode<synchronous>, transform_indices = @transform_8, window_bounds = array<i64: 1, 128>}, {transform_indices = @transform_9, window_bounds = array<i64: 8, 128>}]} {
    %c0 = arith.constant 0 : index
    %c0_0 = arith.constant 0 : index
    %0 = vector.load %arg1[%c0, %c0_0] : memref<8x32xf32, #tpu.memory_space<vmem>>, vector<8x32xf32>
    %c0_1 = arith.constant 0 : index
    %c0_2 = arith.constant 0 : index
    %1 = vector.load %arg2[%c0_1, %c0_2] : memref<32x256xf32, #tpu.memory_space<vmem>>, vector<32x256xf32>
    %cst = arith.constant dense<0.000000e+00> : vector<8x256xf32>
    %2 = tpu.matmul %0, %1, %cst {dimension_numbers = #tpu.dot_dimension_numbers<[1], [0], [0], [1], [0, 0, 1, 1], [], []>} : vector<8x32xf32>, vector<32x256xf32>, vector<8x256xf32> -> vector<8x256xf32>
    %c0_3 = arith.constant 0 : index
    %c0_4 = arith.constant 0 : index
    %3 = vector.load %arg3[%c0_3, %c0_4] : memref<1x256xf32, #tpu.memory_space<vmem>>, vector<1x256xf32>
    %4 = vector.broadcast %3 : vector<1x256xf32> to vector<8x256xf32>
    %5 = arith.addf %2, %4 : vector<8x256xf32>
    %cst_5 = arith.constant 0.000000e+00 : f32
    %6 = vector.broadcast %cst_5 : f32 to vector<8x256xf32>
    %7 = arith.maximumf %5, %6 : vector<8x256xf32>
    %c0_6 = arith.constant 0 : index
    %c0_7 = arith.constant 0 : index
    %8 = vector.load %arg4[%c0_6, %c0_7] : memref<256x128xf32, #tpu.memory_space<vmem>>, vector<256x128xf32>
    %cst_8 = arith.constant dense<0.000000e+00> : vector<8x128xf32>
    %9 = tpu.matmul %7, %8, %cst_8 {dimension_numbers = #tpu.dot_dimension_numbers<[1], [0], [0], [1], [0, 0, 1, 1], [], []>} : vector<8x256xf32>, vector<256x128xf32>, vector<8x128xf32> -> vector<8x128xf32>
    %c0_9 = arith.constant 0 : index
    %c0_10 = arith.constant 0 : index
    %10 = vector.load %arg5[%c0_9, %c0_10] : memref<1x128xf32, #tpu.memory_space<vmem>>, vector<1x128xf32>
    %11 = vector.broadcast %10 : vector<1x128xf32> to vector<8x128xf32>
    %12 = arith.addf %9, %11 : vector<8x128xf32>
    %cst_11 = arith.constant 0.000000e+00 : f32
    %13 = vector.broadcast %cst_11 : f32 to vector<8x128xf32>
    %14 = arith.maximumf %12, %13 : vector<8x128xf32>
    %c0_12 = arith.constant 0 : index
    %c0_13 = arith.constant 0 : index
    %15 = vector.load %arg6[%c0_12, %c0_13] : memref<128x128xf32, #tpu.memory_space<vmem>>, vector<128x128xf32>
    %cst_14 = arith.constant dense<0.000000e+00> : vector<8x128xf32>
    %16 = tpu.matmul %14, %15, %cst_14 {dimension_numbers = #tpu.dot_dimension_numbers<[1], [0], [0], [1], [0, 0, 1, 1], [], []>} : vector<8x128xf32>, vector<128x128xf32>, vector<8x128xf32> -> vector<8x128xf32>
    %c0_15 = arith.constant 0 : index
    %c0_16 = arith.constant 0 : index
    %17 = vector.load %arg7[%c0_15, %c0_16] : memref<1x128xf32, #tpu.memory_space<vmem>>, vector<1x128xf32>
    %18 = vector.broadcast %17 : vector<1x128xf32> to vector<8x128xf32>
    %19 = arith.addf %16, %18 : vector<8x128xf32>
    %cst_17 = arith.constant 0.000000e+00 : f32
    %20 = vector.broadcast %cst_17 : f32 to vector<8x128xf32>
    %21 = arith.maximumf %19, %20 : vector<8x128xf32>
    %c0_18 = arith.constant 0 : index
    %c0_19 = arith.constant 0 : index
    %22 = vector.load %arg8[%c0_18, %c0_19] : memref<128x128xf32, #tpu.memory_space<vmem>>, vector<128x128xf32>
    %cst_20 = arith.constant dense<0.000000e+00> : vector<8x128xf32>
    %23 = tpu.matmul %21, %22, %cst_20 {dimension_numbers = #tpu.dot_dimension_numbers<[1], [0], [0], [1], [0, 0, 1, 1], [], []>} : vector<8x128xf32>, vector<128x128xf32>, vector<8x128xf32> -> vector<8x128xf32>
    %c0_21 = arith.constant 0 : index
    %c0_22 = arith.constant 0 : index
    %24 = vector.load %arg9[%c0_21, %c0_22] : memref<1x128xf32, #tpu.memory_space<vmem>>, vector<1x128xf32>
    %25 = vector.broadcast %24 : vector<1x128xf32> to vector<8x128xf32>
    %26 = arith.addf %23, %25 : vector<8x128xf32>
    %c0_23 = arith.constant 0 : index
    %c0_24 = arith.constant 0 : index
    %27 = vector.load %arg10[%c0_23, %c0_24] : memref<8x128xf32, #tpu.memory_space<vmem>>, vector<8x128xf32>
    tpu.vector_store %arg10[%c0_23, %c0_24], %26 {strides = array<i32>} : memref<8x128xf32, #tpu.memory_space<vmem>>, vector<8x128xf32>,
    return
  }
  func.func @transform_0(%arg0: i32) -> (i32, i32) {
    %c0_i32 = arith.constant 0 : i32
    %c0_i32_0 = arith.constant 0 : i32
    return %arg0, %c0_i32 : i32, i32
  }
  func.func @transform_1(%arg0: i32) -> (i32, i32) {
    %c0_i32 = arith.constant 0 : i32
    %c0_i32_0 = arith.constant 0 : i32
    %c0_i32_1 = arith.constant 0 : i32
    return %c0_i32, %c0_i32_0 : i32, i32
  }
  func.func @transform_2(%arg0: i32) -> (i32, i32) {
    %c0_i32 = arith.constant 0 : i32
    %c0_i32_0 = arith.constant 0 : i32
    %c0_i32_1 = arith.constant 0 : i32
    return %c0_i32, %c0_i32_0 : i32, i32
  }
  func.func @transform_3(%arg0: i32) -> (i32, i32) {
    %c0_i32 = arith.constant 0 : i32
    %c0_i32_0 = arith.constant 0 : i32
    %c0_i32_1 = arith.constant 0 : i32
    return %c0_i32, %c0_i32_0 : i32, i32
  }
  func.func @transform_4(%arg0: i32) -> (i32, i32) {
    %c0_i32 = arith.constant 0 : i32
    %c0_i32_0 = arith.constant 0 : i32
    %c0_i32_1 = arith.constant 0 : i32
    return %c0_i32, %c0_i32_0 : i32, i32
  }
  func.func @transform_5(%arg0: i32) -> (i32, i32) {
    %c0_i32 = arith.constant 0 : i32
    %c0_i32_0 = arith.constant 0 : i32
    %c0_i32_1 = arith.constant 0 : i32
    return %c0_i32, %c0_i32_0 : i32, i32
  }
  func.func @transform_6(%arg0: i32) -> (i32, i32) {
    %c0_i32 = arith.constant 0 : i32
    %c0_i32_0 = arith.constant 0 : i32
    %c0_i32_1 = arith.constant 0 : i32
    return %c0_i32, %c0_i32_0 : i32, i32
  }
  func.func @transform_7(%arg0: i32) -> (i32, i32) {
    %c0_i32 = arith.constant 0 : i32
    %c0_i32_0 = arith.constant 0 : i32
    %c0_i32_1 = arith.constant 0 : i32
    return %c0_i32, %c0_i32_0 : i32, i32
  }
  func.func @transform_8(%arg0: i32) -> (i32, i32) {
    %c0_i32 = arith.constant 0 : i32
    %c0_i32_0 = arith.constant 0 : i32
    %c0_i32_1 = arith.constant 0 : i32
    return %c0_i32, %c0_i32_0 : i32, i32
  }
  func.func @transform_9(%arg0: i32) -> (i32, i32) {
    %c0_i32 = arith.constant 0 : i32
    %c0_i32_0 = arith.constant 0 : i32
    return %arg0, %c0_i32 : i32, i32
  }
}

</mosaic_0001>

<llo_original>
// kernel: met2_forward.1
$region0: #{met2_forward.1}
  #allocation0 [shape = 'u32[]', space=smem, size = 0x4, offset = 0x4, fixed_abs, tag = 'smem constant byte address 0x4 - core index']
  #allocation1 [shape = 'u32[144,128]{1,0:T(1,128)}', space=vmem, size = 0x12000, scoped, tag = 'internal scratch']
  %s0 = inlined_call_operand.vmem [shape: f32[16,32], index: 0, kind: input, shape index: {}]
  %s1 = inlined_call_operand.vmem [shape: f32[32,256], index: 1, kind: input, shape index: {}]
  %s2 = inlined_call_operand.vmem [shape: f32[1,256], index: 2, kind: input, shape index: {}]
  %s3 = inlined_call_operand.vmem [shape: f32[256,128], index: 3, kind: input, shape index: {}]
  %s4 = inlined_call_operand.vmem [shape: f32[1,128], index: 4, kind: input, shape index: {}]
  %s5 = inlined_call_operand.vmem [shape: f32[128,128], index: 5, kind: input, shape index: {}]
  %s6 = inlined_call_operand.vmem [shape: f32[1,128], index: 6, kind: input, shape index: {}]
  %s7 = inlined_call_operand.vmem [shape: f32[128,128], index: 7, kind: input, shape index: {}]
  %s8 = inlined_call_operand.vmem [shape: f32[1,128], index: 8, kind: input, shape index: {}]
  %s9 = inlined_call_operand.hbm [shape: f32[16,128], index: 9, kind: output, shape index: {}]
  %s10 = sld [smem:[#allocation0]]
  $region69: #{met2_forward.1} parent=0
    _
  %s12 = ssub.s32 1, %s10
  %s13 = scalar_select 0, %s12, %s10
  $region1: #{met2_forward.1} parent=0
    #allocation2 [shape = 'u8[8192]{0}', space=vmem, size = 0x2000, scoped, tag = 'output window, operand 0']
    #allocation3 [shape = 's32[2]{0}', space=sflag, size = 0x8, scoped, tag = 'scoped memory for met2_forward.1']
    %14 = vsyncpa [#allocation3], 0
    %s15 = scalar_lea.sflag [#allocation3], 1
    %16 = vsyncpa %s15, 0
    loop: start=0, step=1, limit=4
    $region2: #{met2_forward.1} parent=1 // loop_pre_header
      _
    $region3: #{met2_forward.1} parent=1 // loop_header
      %s18 = sphi 0, %s22
      %p19 = scmp.ge.s32.totalorder %s18, 4
      %s28 = sphi 0, %s30
      %s31 = sphi 0, %s28
      %s32 = sphi 0, %s31
      %s48 = sphi 0, %s32
      %s52 = sphi 0, %s52
      %s54 = sphi 0, %s52
      %s55 = sphi 0, %s54
      %s69 = sphi 0, %s55
      %s73 = sphi 0, %s73
      %s75 = sphi 0, %s73
      %s76 = sphi 0, %s75
      %s90 = sphi 0, %s76
      %s94 = sphi 0, %s94
      %s96 = sphi 0, %s94
      %s97 = sphi 0, %s96
      %s111 = sphi 0, %s97
      %s115 = sphi 0, %s115
      %s117 = sphi 0, %s115
      %s118 = sphi 0, %s117
      %s132 = sphi 0, %s118
      %s136 = sphi 0, %s136
      %s138 = sphi 0, %s136
      %s139 = sphi 0, %s138
      %s153 = sphi 0, %s139
      %s157 = sphi 0, %s157
      %s159 = sphi 0, %s157
      %s160 = sphi 0, %s159
      %s174 = sphi 0, %s160
      %s178 = sphi 0, %s178
      %s180 = sphi 0, %s178
      %s181 = sphi 0, %s180
      %s195 = sphi 0, %s181
      %s199 = sphi 0, %s199
      %s201 = sphi 0, %s199
      %s202 = sphi 0, %s201
      %s216 = sphi 0, %s202
      %s222 = sphi 0, %s224
      %s225 = sphi 0, %s222
      %s226 = sphi 0, %s225
      %s242 = sphi 0, %s226
    $region4: #{met2_forward.1} parent=1 // loop_header_branch
      %21 = sbr.rel (%p19) target = $region8
    $region5: #{met2_forward.1} parent=1 // loop_body
      %s23 = ssub.s32 %s18, 1
      %s24 = ssub.s32 %s18, 2
      %s25 = sadd.s32 %s18, 1
      %s26 = ssub.s32 %s18, %s25
      %p27 = scmp.eq.s32.totalorder %s26, 0
      %s29 = sadd.s32 %s28, 1
      %s30 = scalar_select %p27, %s28, %s29
      %p33 = pneg %p27
      %p34 = scmp.eq.s32.totalorder %s18, 1
      %p35 = por %p33, %p34
      %p36 = scmp.ne.s32.totalorder %s28, %s31
      %p37 = scmp.eq.s32.totalorder %s18, 0
      %p38 = por %p36, %p37
      %p39 = scmp.ne.s32.totalorder %s28, %s31
      %p40 = scmp.eq.s32.totalorder %s23, 1
      %p41 = por %p39, %p40
      %p42 = scmp.ne.s32.totalorder %s31, %s32
      %p43 = scmp.eq.s32.totalorder %s23, 0
      %p44 = por %p42, %p43
      %p45 = scmp.ne.s32.totalorder %s31, %s32
      %p46 = scmp.eq.s32.totalorder %s24, 1
      %p47 = por %p45, %p46
      %p49 = scmp.ne.s32.totalorder %s32, %s48
      %p50 = scmp.eq.s32.totalorder %s24, 0
      %p51 = por %p49, %p50
      %s53 = sadd.s32 %s52, 1
      %p56 = scmp.eq.s32.totalorder %s18, 1
      %p57 = scmp.ne.s32.totalorder %s52, %s54
      %p58 = scmp.eq.s32.totalorder %s18, 0
      %p59 = por %p57, %p58
      %p60 = scmp.ne.s32.totalorder %s52, %s54
      %p61 = scmp.eq.s32.totalorder %s23, 1
      %p62 = por %p60, %p61
      %p63 = scmp.ne.s32.totalorder %s54, %s55
      %p64 = scmp.eq.s32.totalorder %s23, 0
      %p65 = por %p63, %p64
      %p66 = scmp.ne.s32.totalorder %s54, %s55
      %p67 = scmp.eq.s32.totalorder %s24, 1
      %p68 = por %p66, %p67
      %p70 = scmp.ne.s32.totalorder %s55, %s69
      %p71 = scmp.eq.s32.totalorder %s24, 0
      %p72 = por %p70, %p71
      %s74 = sadd.s32 %s73, 1
      %p77 = scmp.eq.s32.totalorder %s18, 1
      %p78 = scmp.ne.s32.totalorder %s73, %s75
      %p79 = scmp.eq.s32.totalorder %s18, 0
      %p80 = por %p78, %p79
      %p81 = scmp.ne.s32.totalorder %s73, %s75
      %p82 = scmp.eq.s32.totalorder %s23, 1
      %p83 = por %p81, %p82
      %p84 = scmp.ne.s32.totalorder %s75, %s76
      %p85 = scmp.eq.s32.totalorder %s23, 0
      %p86 = por %p84, %p85
      %p87 = scmp.ne.s32.totalorder %s75, %s76
      %p88 = scmp.eq.s32.totalorder %s24, 1
      %p89 = por %p87, %p88
      %p91 = scmp.ne.s32.totalorder %s76, %s90
      %p92 = scmp.eq.s32.totalorder %s24, 0
      %p93 = por %p91, %p92
      %s95 = sadd.s32 %s94, 1
      %p98 = scmp.eq.s32.totalorder %s18, 1
      %p99 = scmp.ne.s32.totalorder %s94, %s96
      %p100 = scmp.eq.s32.totalorder %s18, 0
      %p101 = por %p99, %p100
      %p102 = scmp.ne.s32.totalorder %s94, %s96
      %p103 = scmp.eq.s32.totalorder %s23, 1
      %p104 = por %p102, %p103
      %p105 = scmp.ne.s32.totalorder %s96, %s97
      %p106 = scmp.eq.s32.totalorder %s23, 0
      %p107 = por %p105, %p106
      %p108 = scmp.ne.s32.totalorder %s96, %s97
      %p109 = scmp.eq.s32.totalorder %s24, 1
      %p110 = por %p108, %p109
      %p112 = scmp.ne.s32.totalorder %s97, %s111
      %p113 = scmp.eq.s32.totalorder %s24, 0
      %p114 = por %p112, %p113
      %s116 = sadd.s32 %s115, 1
      %p119 = scmp.eq.s32.totalorder %s18, 1
      %p120 = scmp.ne.s32.totalorder %s115, %s117
      %p121 = scmp.eq.s32.totalorder %s18, 0
      %p122 = por %p120, %p121
      %p123 = scmp.ne.s32.totalorder %s115, %s117
      %p124 = scmp.eq.s32.totalorder %s23, 1
      %p125 = por %p123, %p124
      %p126 = scmp.ne.s32.totalorder %s117, %s118
      %p127 = scmp.eq.s32.totalorder %s23, 0
      %p128 = por %p126, %p127
      %p129 = scmp.ne.s32.totalorder %s117, %s118
      %p130 = scmp.eq.s32.totalorder %s24, 1
      %p131 = por %p129, %p130
      %p133 = scmp.ne.s32.totalorder %s118, %s132
      %p134 = scmp.eq.s32.totalorder %s24, 0
      %p135 = por %p133, %p134
      %s137 = sadd.s32 %s136, 1
      %p140 = scmp.eq.s32.totalorder %s18, 1
      %p141 = scmp.ne.s32.totalorder %s136, %s138
      %p142 = scmp.eq.s32.totalorder %s18, 0
      %p143 = por %p141, %p142
      %p144 = scmp.ne.s32.totalorder %s136, %s138
      %p145 = scmp.eq.s32.totalorder %s23, 1
      %p146 = por %p144, %p145
      %p147 = scmp.ne.s32.totalorder %s138, %s139
      %p148 = scmp.eq.s32.totalorder %s23, 0
      %p149 = por %p147, %p148
      %p150 = scmp.ne.s32.totalorder %s138, %s139
      %p151 = scmp.eq.s32.totalorder %s24, 1
      %p152 = por %p150, %p151
      %p154 = scmp.ne.s32.totalorder %s139, %s153
      %p155 = scmp.eq.s32.totalorder %s24, 0
      %p156 = por %p154, %p155
      %s158 = sadd.s32 %s157, 1
      %p161 = scmp.eq.s32.totalorder %s18, 1
      %p162 = scmp.ne.s32.totalorder %s157, %s159
      %p163 = scmp.eq.s32.totalorder %s18, 0
      %p164 = por %p162, %p163
      %p165 = scmp.ne.s32.totalorder %s157, %s159
      %p166 = scmp.eq.s32.totalorder %s23, 1
      %p167 = por %p165, %p166
      %p168 = scmp.ne.s32.totalorder %s159, %s160
      %p169 = scmp.eq.s32.totalorder %s23, 0
      %p170 = por %p168, %p169
      %p171 = scmp.ne.s32.totalorder %s159, %s160
      %p172 = scmp.eq.s32.totalorder %s24, 1
      %p173 = por %p171, %p172
      %p175 = scmp.ne.s32.totalorder %s160, %s174
      %p176 = scmp.eq.s32.totalorder %s24, 0
      %p177 = por %p175, %p176
      %s179 = sadd.s32 %s178, 1
      %p182 = scmp.eq.s32.totalorder %s18, 1
      %p183 = scmp.ne.s32.totalorder %s178, %s180
      %p184 = scmp.eq.s32.totalorder %s18, 0
      %p185 = por %p183, %p184
      %p186 = scmp.ne.s32.totalorder %s178, %s180
      %p187 = scmp.eq.s32.totalorder %s23, 1
      %p188 = por %p186, %p187
      %p189 = scmp.ne.s32.totalorder %s180, %s181
      %p190 = scmp.eq.s32.totalorder %s23, 0
      %p191 = por %p189, %p190
      %p192 = scmp.ne.s32.totalorder %s180, %s181
      %p193 = scmp.eq.s32.totalorder %s24, 1
      %p194 = por %p192, %p193
      %p196 = scmp.ne.s32.totalorder %s181, %s195
      %p197 = scmp.eq.s32.totalorder %s24, 0
      %p198 = por %p196, %p197
      %s200 = sadd.s32 %s199, 1
      %p203 = scmp.eq.s32.totalorder %s18, 1
      %p204 = scmp.ne.s32.totalorder %s199, %s201
      %p205 = scmp.eq.s32.totalorder %s18, 0
      %p206 = por %p204, %p205
      %p207 = scmp.ne.s32.totalorder %s199, %s201
      %p208 = scmp.eq.s32.totalorder %s23, 1
      %p209 = por %p207, %p208
      %p210 = scmp.ne.s32.totalorder %s201, %s202
      %p211 = scmp.eq.s32.totalorder %s23, 0
      %p212 = por %p210, %p211
      %p213 = scmp.ne.s32.totalorder %s201, %s202
      %p214 = scmp.eq.s32.totalorder %s24, 1
      %p215 = por %p213, %p214
      %p217 = scmp.ne.s32.totalorder %s202, %s216
      %p218 = scmp.eq.s32.totalorder %s24, 0
      %p219 = por %p217, %p218
      %s220 = ssub.s32 %s18, %s25
      %p221 = scmp.eq.s32.totalorder %s220, 0
      %s223 = sadd.s32 %s222, 1
      %s224 = scalar_select %p221, %s222, %s223
      %p227 = pneg %p221
      %p228 = scmp.eq.s32.totalorder %s18, 1
      %p229 = por %p227, %p228
      %p230 = scmp.ne.s32.totalorder %s222, %s225
      %p231 = scmp.eq.s32.totalorder %s18, 0
      %p232 = por %p230, %p231
      %p233 = scmp.ne.s32.totalorder %s222, %s225
      %p234 = scmp.eq.s32.totalorder %s23, 1
      %p235 = por %p233, %p234
      %p236 = scmp.ne.s32.totalorder %s225, %s226
      %p237 = scmp.eq.s32.totalorder %s23, 0
      %p238 = por %p236, %p237
      %p239 = scmp.ne.s32.totalorder %s225, %s226
      %p240 = scmp.eq.s32.totalorder %s24, 1
      %p241 = por %p239, %p240
      %p243 = scmp.ne.s32.totalorder %s226, %s242
      %p244 = scmp.eq.s32.totalorder %s24, 0
      %p245 = por %p243, %p244
      %p246 = scmp.le.s32.totalorder 1, %s18
      %p247 = scmp.lt.s32.totalorder %s18, 3
      %p248 = pnand %p246, %p247
      %p249 = pneg %p248
      // Predicated region
      $region9: #{met2_forward.1} parent=5 // pred_check
        _
      $region10: #{met2_forward.1} parent=5 // pred_check_branch
        %251 = sbr.rel (%p248) target = $region12
      $region11: #{met2_forward.1} parent=5 // pred_region
        %s252 = ssub.s32 %s18, 1
        // Predicated region
        $region13: #{met2_forward.1} parent=11 // pred_check
          %p253 = pneg %p65
        $region14: #{met2_forward.1} parent=11 // pred_check_branch
          %255 = sbr.rel (%p253) target = $region16
        $region15: #{met2_forward.1} parent=11 // pred_region
          _
        $region16: #{met2_forward.1} parent=11 // pred_fallthru
          _
        // Predicated region
        $region17: #{met2_forward.1} parent=11 // pred_check
          %p256 = pneg %p86
        $region18: #{met2_forward.1} parent=11 // pred_check_branch
          %258 = sbr.rel (%p256) target = $region20
        $region19: #{met2_forward.1} parent=11 // pred_region
          _
        $region20: #{met2_forward.1} parent=11 // pred_fallthru
          _
        // Predicated region
        $region21: #{met2_forward.1} parent=11 // pred_check
          %p259 = pneg %p107
        $region22: #{met2_forward.1} parent=11 // pred_check_branch
          %261 = sbr.rel (%p259) target = $region24
        $region23: #{met2_forward.1} parent=11 // pred_region
          _
        $region24: #{met2_forward.1} parent=11 // pred_fallthru
          _
        // Predicated region
        $region25: #{met2_forward.1} parent=11 // pred_check
          %p262 = pneg %p128
        $region26: #{met2_forward.1} parent=11 // pred_check_branch
          %264 = sbr.rel (%p262) target = $region28
        $region27: #{met2_forward.1} parent=11 // pred_region
          _
        $region28: #{met2_forward.1} parent=11 // pred_fallthru
          _
        // Predicated region
        $region29: #{met2_forward.1} parent=11 // pred_check
          %p265 = pneg %p149
        $region30: #{met2_forward.1} parent=11 // pred_check_branch
          %267 = sbr.rel (%p265) target = $region32
        $region31: #{met2_forward.1} parent=11 // pred_region
          _
        $region32: #{met2_forward.1} parent=11 // pred_fallthru
          _
        // Predicated region
        $region33: #{met2_forward.1} parent=11 // pred_check
          %p268 = pneg %p170
        $region34: #{met2_forward.1} parent=11 // pred_check_branch
          %270 = sbr.rel (%p268) target = $region36
        $region35: #{met2_forward.1} parent=11 // pred_region
          _
        $region36: #{met2_forward.1} parent=11 // pred_fallthru
          _
        // Predicated region
        $region37: #{met2_forward.1} parent=11 // pred_check
          %p271 = pneg %p191
        $region38: #{met2_forward.1} parent=11 // pred_check_branch
          %273 = sbr.rel (%p271) target = $region40
        $region39: #{met2_forward.1} parent=11 // pred_region
          _
        $region40: #{met2_forward.1} parent=11 // pred_fallthru
          _
        // Predicated region
        $region41: #{met2_forward.1} parent=11 // pred_check
          %p274 = pneg %p212
        $region42: #{met2_forward.1} parent=11 // pred_check_branch
          %276 = sbr.rel (%p274) target = $region44
        $region43: #{met2_forward.1} parent=11 // pred_region
          _
        $region44: #{met2_forward.1} parent=11 // pred_fallthru
          _
      $region12: #{met2_forward.1} parent=5 // pred_fallthru
        _
      %p277 = scmp.lt.s32.totalorder %s18, 2
      // Predicated region
      $region45: #{met2_forward.1} parent=5 // pred_check
        %p278 = pneg %p277
      $region46: #{met2_forward.1} parent=5 // pred_check_branch
        %280 = sbr.rel (%p278) target = $region48
      $region47: #{met2_forward.1} parent=5 // pred_region
        // Predicated region
        $region49: #{met2_forward.1} parent=47 // pred_check
          %p281 = pneg %p38
        $region50: #{met2_forward.1} parent=47 // pred_check_branch
          %283 = sbr.rel (%p281) target = $region52
        $region51: #{met2_forward.1} parent=47 // pred_region
          %p284 = scmp.lt.s32.totalorder %s18, 1
          %s285 = scalar_select %p284, %s18, 1
          %s286 = smul.addr %s285, 8
          %s287 = scalar_lea.vmem %s0, %s286
        $region52: #{met2_forward.1} parent=47 // pred_fallthru
          _
      $region48: #{met2_forward.1} parent=5 // pred_fallthru
        _
      %p288 = scmp.le.s32.totalorder 1, %s18
      %p289 = scmp.lt.s32.totalorder %s18, 3
      %p290 = pnand %p288, %p289
      %p291 = pneg %p290
      // Predicated region
      $region53: #{met2_forward.1} parent=5 // pred_check
        _
      $region54: #{met2_forward.1} parent=5 // pred_check_branch
        %293 = sbr.rel (%p290) target = $region56
      $region55: #{met2_forward.1} parent=5 // pred_region
        %s294 = ssub.s32 %s18, 1
        %p295 = scmp.lt.s32.totalorder %s23, 1
        %s296 = scalar_select %p295, %s23, 1
        %s297 = smul.addr %s296, 8
        %s298 = scalar_lea.vmem %s0, %s297
        %p299 = pneg %p44
        %p300 = pneg %p41
        %p301 = pneg %p65
        %p302 = pneg %p62
        %p303 = pneg %p86
        %p304 = pneg %p83
        %p305 = pneg %p107
        %p306 = pneg %p104
        %p307 = pneg %p128
        %p308 = pneg %p125
        %p309 = pneg %p149
        %p310 = pneg %p146
        %p311 = pneg %p170
        %p312 = pneg %p167
        %p313 = pneg %p191
        %p314 = pneg %p188
        %p315 = pneg %p212
        %p316 = pneg %p209
        %p317 = pneg %p238
        %p318 = pneg %p235
        %s319 = sand.u32 %s225, 1
        %s320 = scalar_lea.sflag [#allocation3], %s319
        %s321 = sand.u32 %s225, 1
        %s322 = smul.addr %s321, 8
        %s323 = scalar_lea.vmem [#allocation2], %s322
        %p324 = scmp.lt.s32.totalorder %s23, 1
        %s325 = scalar_select %p324, %s23, 1
        %s326 = smul.addr %s325, 8
        %s327 = scalar_lea.vmem %s0, %s326
        %v328 = vld [vmem:[%s327] sm:$0xff]
        %v329 = vld [vmem:[%s1] sm:$0xff]
        %v330 = vld [vmem:[%s1 + $0x8] sm:$0xff]
        %v331 = vld [vmem:[%s1 + $0x10] sm:$0xff]
        %v332 = vld [vmem:[%s1 + $0x18] sm:$0xff]
        %v333 = vld [vmem:[%s1 + $0x20] sm:$0xff]
        %v334 = vld [vmem:[%s1 + $0x28] sm:$0xff]
        %v335 = vld [vmem:[%s1 + $0x30] sm:$0xff]
        %v336 = vld [vmem:[%s1 + $0x38] sm:$0xff]
        %v337 = vld [vmem:[%s2] sm:$0x3]
        %v339 = vlaneseq
        %v340 = vshrl.u32 %v339, 7
        %v341 = vsub.s32 0, %v340
        %v342 = vrot.slane %v337, %v341
        %v343 = vlaneseq
        %v344 = vshrl.u32 %v343, 7
        %v345 = vsub.s32 1, %v344
        %v346 = vrot.slane %v337, %v345
        %vm349 = vcmask 261120
        %v351 = vsel %vm349, %v328, 0
        %353 = vmatprep.subr.mxu0 %v330
        %354 = vmatpush1.msra.mxu0 %v329
        %355 = vmatprep.subr.mxu0 %v332
        %356 = vmatpush1.msra.mxu0 %v331
        %357 = vmatprep.subr.mxu0 %v334
        %358 = vmatpush1.msra.mxu0 %v333
        %359 = vmatprep.subr.mxu0 %v336
        %360 = vmatpush1.msra.mxu0 %v335
        %361 = vmatprep.subr.mxu0 0.0
        %362 = vmatpush1.msra.mxu0 0.0
        %363 = vmatprep.subr.mxu0 0.0
        %364 = vmatpush1.msra.mxu0 0.0
        %365 = vmatprep.subr.mxu0 0.0
        %366 = vmatpush1.msra.mxu0 0.0
        %367 = vmatprep.subr.mxu0 0.0
        %368 = vmatpush1.msra.mxu0 0.0
        %369 = vmatprep.subr.mxu0 0.0
        %370 = vmatpush1.msra.mxu0 0.0
        %371 = vmatprep.subr.mxu0 0.0
        %372 = vmatpush1.msra.mxu0 0.0
        %373 = vmatprep.subr.mxu0 0.0
        %374 = vmatpush1.msra.mxu0 0.0
        %375 = vmatprep.subr.mxu0 0.0
        %376 = vmatpush1.msra.mxu0 0.0
        %377 = vmatprep.subr.mxu0 0.0
        %378 = vmatpush1.msra.mxu0 0.0
        %379 = vmatprep.subr.mxu0 0.0
        %380 = vmatpush1.msra.mxu0 0.0
        %381 = vmatprep.subr.mxu0 0.0
        %382 = vmatpush1.msra.mxu0 0.0
        %383 = vmatprep.subr.mxu0 0.0
        %384 = vmatpush1.msra.mxu0 0.0
        %385 = vmatprep.subr.mxu0 0.0
        %386 = vmatpush1.msra.mxu0 0.0
        %387 = vmatprep.subr.mxu0 0.0
        %388 = vmatpush1.msra.mxu0 0.0
        %389 = vmatprep.subr.mxu0 0.0
        %390 = vmatpush1.msra.mxu0 0.0
        %391 = vmatprep.subr.mxu0 0.0
        %392 = vmatpush1.msra.mxu0 0.0
        %393 = vmatprep.subr.mxu0 0.0
        %394 = vmatpush1.msra.mxu0 0.0
        %395 = vmatprep.subr.mxu0 0.0
        %396 = vmatpush1.msra.mxu0 0.0
        %397 = vmatprep.subr.mxu0 0.0
        %398 = vmatpush1.msra.mxu0 0.0
        %399 = vmatprep.subr.mxu0 0.0
        %400 = vmatpush1.msra.mxu0 0.0
        %401 = vmatprep.subr.mxu0 0.0
        %402 = vmatpush1.msra.mxu0 0.0
        %403 = vmatprep.subr.mxu0 0.0
        %404 = vmatpush1.msra.mxu0 0.0
        %405 = vmatprep.subr.mxu0 0.0
        %406 = vmatpush1.msra.mxu0 0.0
        %407 = vmatprep.subr.mxu0 0.0
        %408 = vmatpush1.msra.mxu0 0.0
        %409 = vmatprep.subr.mxu0 0.0
        %410 = vmatpush1.msra.mxu0 0.0
        %411 = vmatprep.subr.mxu0 0.0
        %412 = vmatpush1.msra.mxu0 0.0
        %413 = vmatprep.subr.mxu0 0.0
        %414 = vmatpush1.msra.mxu0 0.0
        %415 = vmatprep.subr.mxu0 0.0
        %416 = vmatpush1.msra.mxu0 0.0
        %417 = vmatprep.mubr.f32.mxu0 0.0
        %418 = vmatmul.mubr.f32.gmra.mrb[0].mxu0 %v351
        %v419 = vpop.f32.mrb[0].mxu0
        %v420 = vadd.f32 %v342, %v419
        %v421 = vpop.f32.mrb[0].mxu0
        %v422 = vadd.f32 %v346, %v421
        %423 = vdwg.mxu0
        %v424 = vmax.f32 %v420, 0.0
        %v425 = vmax.f32 %v422, 0.0
        %v426 = vld [vmem:[%s3] sm:$0xff]
        %v427 = vld [vmem:[%s3 + $0x8] sm:$0xff]
        %v428 = vld [vmem:[%s3 + $0x10] sm:$0xff]
        %v429 = vld [vmem:[%s3 + $0x18] sm:$0xff]
        %v430 = vld [vmem:[%s3 + $0x20] sm:$0xff]
        %v431 = vld [vmem:[%s3 + $0x28] sm:$0xff]
        %v432 = vld [vmem:[%s3 + $0x30] sm:$0xff]
        %v433 = vld [vmem:[%s3 + $0x38] sm:$0xff]
        %v434 = vld [vmem:[%s3 + $0x40] sm:$0xff]
        %v435 = vld [vmem:[%s3 + $0x48] sm:$0xff]
        %v436 = vld [vmem:[%s3 + $0x50] sm:$0xff]
        %v437 = vld [vmem:[%s3 + $0x58] sm:$0xff]
        %v438 = vld [vmem:[%s3 + $0x60] sm:$0xff]
        %v439 = vld [vmem:[%s3 + $0x68] sm:$0xff]
        %v440 = vld [vmem:[%s3 + $0x70] sm:$0xff]
        %v441 = vld [vmem:[%s3 + $0x78] sm:$0xff]
        %v442 = vld [vmem:[%s3 + $0x80] sm:$0xff]
        %v443 = vld [vmem:[%s3 + $0x88] sm:$0xff]
        %v444 = vld [vmem:[%s3 + $0x90] sm:$0xff]
        %v445 = vld [vmem:[%s3 + $0x98] sm:$0xff]
        %v446 = vld [vmem:[%s3 + $0xa0] sm:$0xff]
        %v447 = vld [vmem:[%s3 + $0xa8] sm:$0xff]
        %v448 = vld [vmem:[%s3 + $0xb0] sm:$0xff]
        %v449 = vld [vmem:[%s3 + $0xb8] sm:$0xff]
        %v450 = vld [vmem:[%s3 + $0xc0] sm:$0xff]
        %v451 = vld [vmem:[%s3 + $0xc8] sm:$0xff]
        %v452 = vld [vmem:[%s3 + $0xd0] sm:$0xff]
        %v453 = vld [vmem:[%s3 + $0xd8] sm:$0xff]
        %v454 = vld [vmem:[%s3 + $0xe0] sm:$0xff]
        %v455 = vld [vmem:[%s3 + $0xe8] sm:$0xff]
        %v456 = vld [vmem:[%s3 + $0xf0] sm:$0xff]
        %v457 = vld [vmem:[%s3 + $0xf8] sm:$0xff]
        %v458 = vld [vmem:[%s4] sm:$0x1]
        %v460 = vlaneseq
        %v461 = vshrl.u32 %v460, 7
        %v462 = vsub.s32 0, %v461
        %v463 = vrot.slane %v458, %v462
        %465 = vmatprep.subr.mxu0 0.0
        %466 = vmatpush1.msra.mxu0 %v426
        %467 = vmatprep.subr.mxu0 0.0
        %468 = vmatpush1.msra.mxu0 %v427
        %469 = vmatprep.subr.mxu0 0.0
        %470 = vmatpush1.msra.mxu0 %v428
        %471 = vmatprep.subr.mxu0 0.0
        %472 = vmatpush1.msra.mxu0 %v429
        %473 = vmatprep.subr.mxu0 0.0
        %474 = vmatpush1.msra.mxu0 %v430
        %475 = vmatprep.subr.mxu0 0.0
        %476 = vmatpush1.msra.mxu0 %v431
        %477 = vmatprep.subr.mxu0 0.0
        %478 = vmatpush1.msra.mxu0 %v432
        %479 = vmatprep.subr.mxu0 0.0
        %480 = vmatpush1.msra.mxu0 %v433
        %481 = vmatprep.subr.mxu0 0.0
        %482 = vmatpush1.msra.mxu0 %v434
        %483 = vmatprep.subr.mxu0 0.0
        %484 = vmatpush1.msra.mxu0 %v435
        %485 = vmatprep.subr.mxu0 0.0
        %486 = vmatpush1.msra.mxu0 %v436
        %487 = vmatprep.subr.mxu0 0.0
        %488 = vmatpush1.msra.mxu0 %v437
        %489 = vmatprep.subr.mxu0 0.0
        %490 = vmatpush1.msra.mxu0 %v438
        %491 = vmatprep.subr.mxu0 0.0
        %492 = vmatpush1.msra.mxu0 %v439
        %493 = vmatprep.subr.mxu0 0.0
        %494 = vmatpush1.msra.mxu0 %v440
        %495 = vmatprep.subr.mxu0 0.0
        %496 = vmatpush1.msra.mxu0 %v441
        %497 = vmatprep.subr.mxu0 0.0
        %498 = vmatpush1.msra.mxu0 %v442
        %499 = vmatprep.subr.mxu0 0.0
        %500 = vmatpush1.msra.mxu0 %v443
        %501 = vmatprep.subr.mxu0 0.0
        %502 = vmatpush1.msra.mxu0 %v444
        %503 = vmatprep.subr.mxu0 0.0
        %504 = vmatpush1.msra.mxu0 %v445
        %505 = vmatprep.subr.mxu0 0.0
        %506 = vmatpush1.msra.mxu0 %v446
        %507 = vmatprep.subr.mxu0 0.0
        %508 = vmatpush1.msra.mxu0 %v447
        %509 = vmatprep.subr.mxu0 0.0
        %510 = vmatpush1.msra.mxu0 %v448
        %511 = vmatprep.subr.mxu0 0.0
        %512 = vmatpush1.msra.mxu0 %v449
        %513 = vmatprep.subr.mxu0 0.0
        %514 = vmatpush1.msra.mxu0 %v450
        %515 = vmatprep.subr.mxu0 0.0
        %516 = vmatpush1.msra.mxu0 %v451
        %517 = vmatprep.subr.mxu0 0.0
        %518 = vmatpush1.msra.mxu0 %v452
        %519 = vmatprep.subr.mxu0 0.0
        %520 = vmatpush1.msra.mxu0 %v453
        %521 = vmatprep.subr.mxu0 0.0
        %522 = vmatpush1.msra.mxu0 %v454
        %523 = vmatprep.subr.mxu0 0.0
        %524 = vmatpush1.msra.mxu0 %v455
        %525 = vmatprep.subr.mxu0 0.0
        %526 = vmatpush1.msra.mxu0 %v456
        %527 = vmatprep.subr.mxu0 0.0
        %528 = vmatpush1.msra.mxu0 %v457
        %529 = vmatprep.mubr.f32.mxu0 %v425
        %530 = vmatmul.mubr.f32.gmra.mrb[0].mxu0 %v424
        %v531 = vpop.f32.mrb[0].mxu0
        %v532 = vadd.f32 %v463, %v531
        %v533 = vpop.f32.mrb[0].mxu0
        %534 = vdwg.mxu0
        %v535 = vmax.f32 %v532, 0.0
        %v536 = vld [vmem:[%s5] sm:$0xff]
        %v537 = vld [vmem:[%s5 + $0x8] sm:$0xff]
        %v538 = vld [vmem:[%s5 + $0x10] sm:$0xff]
        %v539 = vld [vmem:[%s5 + $0x18] sm:$0xff]
        %v540 = vld [vmem:[%s5 + $0x20] sm:$0xff]
        %v541 = vld [vmem:[%s5 + $0x28] sm:$0xff]
        %v542 = vld [vmem:[%s5 + $0x30] sm:$0xff]
        %v543 = vld [vmem:[%s5 + $0x38] sm:$0xff]
        %v544 = vld [vmem:[%s5 + $0x40] sm:$0xff]
        %v545 = vld [vmem:[%s5 + $0x48] sm:$0xff]
        %v546 = vld [vmem:[%s5 + $0x50] sm:$0xff]
        %v547 = vld [vmem:[%s5 + $0x58] sm:$0xff]
        %v548 = vld [vmem:[%s5 + $0x60] sm:$0xff]
        %v549 = vld [vmem:[%s5 + $0x68] sm:$0xff]
        %v550 = vld [vmem:[%s5 + $0x70] sm:$0xff]
        %v551 = vld [vmem:[%s5 + $0x78] sm:$0xff]
        %v552 = vld [vmem:[%s6] sm:$0x1]
        %v554 = vlaneseq
        %v555 = vshrl.u32 %v554, 7
        %v556 = vsub.s32 0, %v555
        %v557 = vrot.slane %v552, %v556
        %559 = vmatprep.subr.mxu0 0.0
        %560 = vmatpush1.msra.mxu0 %v536
        %561 = vmatprep.subr.mxu0 0.0
        %562 = vmatpush1.msra.mxu0 %v537
        %563 = vmatprep.subr.mxu0 0.0
        %564 = vmatpush1.msra.mxu0 %v538
        %565 = vmatprep.subr.mxu0 0.0
        %566 = vmatpush1.msra.mxu0 %v539
        %567 = vmatprep.subr.mxu0 0.0
        %568 = vmatpush1.msra.mxu0 %v540
        %569 = vmatprep.subr.mxu0 0.0
        %570 = vmatpush1.msra.mxu0 %v541
        %571 = vmatprep.subr.mxu0 0.0
        %572 = vmatpush1.msra.mxu0 %v542
        %573 = vmatprep.subr.mxu0 0.0
        %574 = vmatpush1.msra.mxu0 %v543
        %575 = vmatprep.subr.mxu0 0.0
        %576 = vmatpush1.msra.mxu0 %v544
        %577 = vmatprep.subr.mxu0 0.0
        %578 = vmatpush1.msra.mxu0 %v545
        %579 = vmatprep.subr.mxu0 0.0
        %580 = vmatpush1.msra.mxu0 %v546
        %581 = vmatprep.subr.mxu0 0.0
        %582 = vmatpush1.msra.mxu0 %v547
        %583 = vmatprep.subr.mxu0 0.0
        %584 = vmatpush1.msra.mxu0 %v548
        %585 = vmatprep.subr.mxu0 0.0
        %586 = vmatpush1.msra.mxu0 %v549
        %587 = vmatprep.subr.mxu0 0.0
        %588 = vmatpush1.msra.mxu0 %v550
        %589 = vmatprep.subr.mxu0 0.0
        %590 = vmatpush1.msra.mxu0 %v551
        %591 = vmatprep.subr.mxu0 0.0
        %592 = vmatpush1.msra.mxu0 0.0
        %593 = vmatprep.subr.mxu0 0.0
        %594 = vmatpush1.msra.mxu0 0.0
        %595 = vmatprep.subr.mxu0 0.0
        %596 = vmatpush1.msra.mxu0 0.0
        %597 = vmatprep.subr.mxu0 0.0
        %598 = vmatpush1.msra.mxu0 0.0
        %599 = vmatprep.subr.mxu0 0.0
        %600 = vmatpush1.msra.mxu0 0.0
        %601 = vmatprep.subr.mxu0 0.0
        %602 = vmatpush1.msra.mxu0 0.0
        %603 = vmatprep.subr.mxu0 0.0
        %604 = vmatpush1.msra.mxu0 0.0
        %605 = vmatprep.subr.mxu0 0.0
        %606 = vmatpush1.msra.mxu0 0.0
        %607 = vmatprep.subr.mxu0 0.0
        %608 = vmatpush1.msra.mxu0 0.0
        %609 = vmatprep.subr.mxu0 0.0
        %610 = vmatpush1.msra.mxu0 0.0
        %611 = vmatprep.subr.mxu0 0.0
        %612 = vmatpush1.msra.mxu0 0.0
        %613 = vmatprep.subr.mxu0 0.0
        %614 = vmatpush1.msra.mxu0 0.0
        %615 = vmatprep.subr.mxu0 0.0
        %616 = vmatpush1.msra.mxu0 0.0
        %617 = vmatprep.subr.mxu0 0.0
        %618 = vmatpush1.msra.mxu0 0.0
        %619 = vmatprep.subr.mxu0 0.0
        %620 = vmatpush1.msra.mxu0 0.0
        %621 = vmatprep.subr.mxu0 0.0
        %622 = vmatpush1.msra.mxu0 0.0
        %623 = vmatprep.mubr.f32.mxu0 0.0
        %624 = vmatmul.mubr.f32.gmra.mrb[0].mxu0 %v535
        %v625 = vpop.f32.mrb[0].mxu0
        %v626 = vadd.f32 %v557, %v625
        %v627 = vpop.f32.mrb[0].mxu0
        %628 = vdwg.mxu0
        %v629 = vmax.f32 %v626, 0.0
        %v630 = vld [vmem:[%s7] sm:$0xff]
        %v631 = vld [vmem:[%s7 + $0x8] sm:$0xff]
        %v632 = vld [vmem:[%s7 + $0x10] sm:$0xff]
        %v633 = vld [vmem:[%s7 + $0x18] sm:$0xff]
        %v634 = vld [vmem:[%s7 + $0x20] sm:$0xff]
        %v635 = vld [vmem:[%s7 + $0x28] sm:$0xff]
        %v636 = vld [vmem:[%s7 + $0x30] sm:$0xff]
        %v637 = vld [vmem:[%s7 + $0x38] sm:$0xff]
        %v638 = vld [vmem:[%s7 + $0x40] sm:$0xff]
        %v639 = vld [vmem:[%s7 + $0x48] sm:$0xff]
        %v640 = vld [vmem:[%s7 + $0x50] sm:$0xff]
        %v641 = vld [vmem:[%s7 + $0x58] sm:$0xff]
        %v642 = vld [vmem:[%s7 + $0x60] sm:$0xff]
        %v643 = vld [vmem:[%s7 + $0x68] sm:$0xff]
        %v644 = vld [vmem:[%s7 + $0x70] sm:$0xff]
        %v645 = vld [vmem:[%s7 + $0x78] sm:$0xff]
        %v646 = vld [vmem:[%s8] sm:$0x1]
        %v648 = vlaneseq
        %v649 = vshrl.u32 %v648, 7
        %v650 = vsub.s32 0, %v649
        %v651 = vrot.slane %v646, %v650
        %653 = vmatprep.subr.mxu0 0.0
        %654 = vmatpush1.msra.mxu0 %v630
        %655 = vmatprep.subr.mxu0 0.0
        %656 = vmatpush1.msra.mxu0 %v631
        %657 = vmatprep.subr.mxu0 0.0
        %658 = vmatpush1.msra.mxu0 %v632
        %659 = vmatprep.subr.mxu0 0.0
        %660 = vmatpush1.msra.mxu0 %v633
        %661 = vmatprep.subr.mxu0 0.0
        %662 = vmatpush1.msra.mxu0 %v634
        %663 = vmatprep.subr.mxu0 0.0
        %664 = vmatpush1.msra.mxu0 %v635
        %665 = vmatprep.subr.mxu0 0.0
        %666 = vmatpush1.msra.mxu0 %v636
        %667 = vmatprep.subr.mxu0 0.0
        %668 = vmatpush1.msra.mxu0 %v637
        %669 = vmatprep.subr.mxu0 0.0
        %670 = vmatpush1.msra.mxu0 %v638
        %671 = vmatprep.subr.mxu0 0.0
        %672 = vmatpush1.msra.mxu0 %v639
        %673 = vmatprep.subr.mxu0 0.0
        %674 = vmatpush1.msra.mxu0 %v640
        %675 = vmatprep.subr.mxu0 0.0
        %676 = vmatpush1.msra.mxu0 %v641
        %677 = vmatprep.subr.mxu0 0.0
        %678 = vmatpush1.msra.mxu0 %v642
        %679 = vmatprep.subr.mxu0 0.0
        %680 = vmatpush1.msra.mxu0 %v643
        %681 = vmatprep.subr.mxu0 0.0
        %682 = vmatpush1.msra.mxu0 %v644
        %683 = vmatprep.subr.mxu0 0.0
        %684 = vmatpush1.msra.mxu0 %v645
        %685 = vmatprep.subr.mxu0 0.0
        %686 = vmatpush1.msra.mxu0 0.0
        %687 = vmatprep.subr.mxu0 0.0
        %688 = vmatpush1.msra.mxu0 0.0
        %689 = vmatprep.subr.mxu0 0.0
        %690 = vmatpush1.msra.mxu0 0.0
        %691 = vmatprep.subr.mxu0 0.0
        %692 = vmatpush1.msra.mxu0 0.0
        %693 = vmatprep.subr.mxu0 0.0
        %694 = vmatpush1.msra.mxu0 0.0
        %695 = vmatprep.subr.mxu0 0.0
        %696 = vmatpush1.msra.mxu0 0.0
        %697 = vmatprep.subr.mxu0 0.0
        %698 = vmatpush1.msra.mxu0 0.0
        %699 = vmatprep.subr.mxu0 0.0
        %700 = vmatpush1.msra.mxu0 0.0
        %701 = vmatprep.subr.mxu0 0.0
        %702 = vmatpush1.msra.mxu0 0.0
        %703 = vmatprep.subr.mxu0 0.0
        %704 = vmatpush1.msra.mxu0 0.0
        %705 = vmatprep.subr.mxu0 0.0
        %706 = vmatpush1.msra.mxu0 0.0
        %707 = vmatprep.subr.mxu0 0.0
        %708 = vmatpush1.msra.mxu0 0.0
        %709 = vmatprep.subr.mxu0 0.0
        %710 = vmatpush1.msra.mxu0 0.0
        %711 = vmatprep.subr.mxu0 0.0
        %712 = vmatpush1.msra.mxu0 0.0
        %713 = vmatprep.subr.mxu0 0.0
        %714 = vmatpush1.msra.mxu0 0.0
        %715 = vmatprep.subr.mxu0 0.0
        %716 = vmatpush1.msra.mxu0 0.0
        %717 = vmatprep.mubr.f32.mxu0 0.0
        %718 = vmatmul.mubr.f32.gmra.mrb[0].mxu0 %v629
        %v719 = vpop.f32.mrb[0].mxu0
        %v720 = vadd.f32 %v651, %v719
        %v721 = vpop.f32.mrb[0].mxu0
        %722 = vdwg.mxu0
        %723 = vst [vmem:[%s323] sm:$0xff] %v720
        %s724 = sand.u32 %s225, 1
        %s725 = scalar_lea.sflag [#allocation3], %s724
        %s726 = sand.u32 %s225, 1
        %s727 = smul.addr %s726, 8
        %s728 = scalar_lea.vmem [#allocation2], %s727
        // Predicated region
        $region57: #{met2_forward.1} parent=55 // pred_check
          %p729 = pneg %p235
        $region58: #{met2_forward.1} parent=55 // pred_check_branch
          %731 = sbr.rel (%p729) target = $region60
        $region59: #{met2_forward.1} parent=55 // pred_region
          %s733 = ssub.s32 128, 128
          %734 = vsyncadd %s725, %s733
          %s735 = smul.addr %s23, 128
          %s736 = scalar_lea.hbm %s9, %s735
          %s738 = sshll.u32 %s728, 4
          %s739 = int_to_ptr.vmem [resolvable:$true] %s738
          %741 = dma.vmem_to_hbm [thread:$0]  %s739, 128, %s736, %s725
        $region60: #{met2_forward.1} parent=55 // pred_fallthru
          _
      $region56: #{met2_forward.1} parent=5 // pred_fallthru
        _
      %p742 = scmp.le.s32.totalorder 2, %s18
      // Predicated region
      $region61: #{met2_forward.1} parent=5 // pred_check
        %p743 = pneg %p742
      $region62: #{met2_forward.1} parent=5 // pred_check_branch
        %745 = sbr.rel (%p743) target = $region64
      $region63: #{met2_forward.1} parent=5 // pred_region
        %s746 = ssub.s32 %s18, 2
        // Predicated region
        $region65: #{met2_forward.1} parent=63 // pred_check
          %p747 = pneg %p241
        $region66: #{met2_forward.1} parent=63 // pred_check_branch
          %749 = sbr.rel (%p747) target = $region68
        $region67: #{met2_forward.1} parent=63 // pred_region
          %s750 = sand.u32 %s226, 1
          %s751 = scalar_lea.sflag [#allocation3], %s750
          %s752 = sand.u32 %s226, 1
          %s753 = smul.addr %s752, 8
          %s754 = scalar_lea.vmem [#allocation2], %s753
          %755 = dma.done %s751, 128
        $region68: #{met2_forward.1} parent=63 // pred_fallthru
          _
      $region64: #{met2_forward.1} parent=5 // pred_fallthru
        _
    $region6: #{met2_forward.1} parent=1 // loop_footer
      %s22 = sadd.s32 1, %s18
    $region7: #{met2_forward.1} parent=1 // loop_footer_branch
      %17 = sbr.rel target = $region3
    $region8: #{met2_forward.1} parent=1 // loop_exit
      _
    %756 = vsyncpa [#allocation3], 1
    %s757 = scalar_lea.sflag [#allocation3], 1
    %758 = vsyncpa %s757, 1

</llo_original>
